<compile_context>
chip_gen: v7x
topology: tpu7x:2x2x1
jax: 0.10.0
libtpu: 0.0.40
codegen_flags: <defaults>
</compile_context>

<pallas_src>
import functools
import math

import jax
import jax.numpy as jnp
from jax.experimental import pallas as pl
from jax.experimental.pallas import tpu as pltpu


def _sigmoid(x):
    # Numerically stable sigmoid; tanh lowers to the (otherwise idle) EUP slot.
    return 0.5 * (jnp.tanh(0.5 * x) + 1.0)


def _round_up(x, m):
    return (x + m - 1) // m * m


def _asf_kernel(x_ref, w1_ref, w2_ref, pool_ref, taps_ref, wsp2_ref, exp_ref,
                watt_ref, out_ref, *, H, W):
    """One grid step == B_blk batch elements.

    x_ref    : (B_blk*C,  HWp) VMEM   batch+channels on sublanes, spatial on lanes
    w1_ref   : (B_blk*MID, B_blk*C)   kron(I, w_ch1)
    w2_ref   : (B_blk*C,  B_blk*MID)  kron(I, w_ch2)
    pool_ref : (B_blk,     B_blk*C)   kron(I, 1/C row)     (mean over channels)
    taps_ref : (9, HWp)               border-masked 3x3 tap weights
    wsp2_ref : (1,) SMEM              1x1 spatial conv scalar
    exp_ref  : (B_blk*C,  B_blk)      kron(I, ones column) (broadcast over channels)
    watt_ref : (B_blk*F,  B_blk*C)    kron(I, w_att)
    out_ref  : (B_blk*F,  HWp) VMEM   lane-dense output store
    """
    HW = H * W
    x = x_ref[...].astype(jnp.float32)                                  # (BC, HWp)

    # ---- channel attention: AdaptiveAvgPool2d(1) -> 1x1 -> ReLU -> 1x1 -> sigmoid
    # relu(W1 @ mean(x)) == relu(mean(W1 @ x)); pad lanes are zero so sum/HW is exact.
    xh = jnp.dot(w1_ref[...], x, preferred_element_type=jnp.float32)    # (BM, HWp)
    h = jnp.maximum(jnp.sum(xh, axis=1, keepdims=True) * (1.0 / HW), 0.0)  # (BM, 1)
    hb = jnp.broadcast_to(h, xh.shape)                                   # (BM, HWp)
    ca = _sigmoid(jnp.dot(w2_ref[...], hb,
                          preferred_element_type=jnp.float32))           # (BC, HWp)
    gx = x + ca

    # ---- spatial attention: mean over C -> 3x3 conv (pad=1) -> ReLU -> 1x1 -> sigmoid
    m = jnp.dot(pool_ref[...], gx, preferred_element_type=jnp.float32)   # (B_blk, HWp)
    taps = taps_ref[...].astype(jnp.float32)                             # (9, HWp)
    HWp = m.shape[1]
    acc = jnp.zeros_like(m)
    k = 0
    for oy in (-1, 0, 1):
        for ox in (-1, 0, 1):
            d = oy * W + ox                     # flat-index offset of this tap
            shifted = m if d == 0 else pltpu.roll(m, (-d) % HWp, axis=1)
            acc = acc + shifted * taps[k:k + 1, :]   # mask+weight folded into tap row
            k += 1
    s = _sigmoid(jnp.maximum(acc, 0.0) * wsp2_ref[0])                    # (B_blk, HWp)
    gx2 = gx + jnp.dot(exp_ref[...], s, preferred_element_type=jnp.float32)  # (BC, HWp)

    # ---- attention_wise: 1x1 conv C -> F (block-diag contraction), sigmoid
    mix = jnp.dot(watt_ref[...], gx2, preferred_element_type=jnp.float32)    # (BF, HWp)
    out_ref[...] = _sigmoid(mix).astype(out_ref.dtype)


def _build_tap_planes(H, W, HW_pad, w_sp1):
    """(9, HW_pad) table: 3x3 tap weight where the (zero-padded) source pixel is
    in-bounds, 0 elsewhere. Folding mask*weight once here removes per-step
    iota / div / mod / select work from the kernel."""
    HW = H * W
    idx = jnp.arange(HW, dtype=jnp.int32)
    row = idx // W
    col = idx % W
    planes = []
    for oy in (-1, 0, 1):
        for ox in (-1, 0, 1):
            ok = jnp.ones((HW,), dtype=bool)
            if oy == -1:
                ok &= row >= 1
            if oy == 1:
                ok &= row <= H - 2
            if ox == -1:
                ok &= col >= 1
            if ox == 1:
                ok &= col <= W - 2
            planes.append(jnp.where(ok, w_sp1[oy + 1, ox + 1], 0.0))
    taps = jnp.stack(planes, axis=0).astype(jnp.float32)                 # (9, HW)
    if HW_pad > HW:
        taps = jnp.pad(taps, ((0, 0), (0, HW_pad - HW)))
    return taps


def _pick_b_blk(N, C, F, HW_pad, target_bytes=1 << 20):
    """Batch elements per block: dense f32 sublanes for both (B*C) and (B*F),
    ~<=1 MiB of in+out per block, and >=2 grid steps when the batch allows
    (so v7x's two TensorCores both get work)."""
    uc = 8 // math.gcd(C, 8)
    uf = 8 // math.gcd(F, 8)
    unit = uc * uf // math.gcd(uc, uf)
    per_item = (C + F) * HW_pad * 4
    cap = max(unit, (target_bytes // max(per_item, 1)) // unit * unit)
    n_unit = _round_up(N, unit)
    if n_unit // unit < 2:
        choose = n_unit
    else:
        choose = max(unit, (n_unit // 2) // unit * unit)
    return max(unit, min(cap, choose))


def scale_channel_spatial_attention(x_nchw, w_ch1, w_ch2, w_sp1, w_sp2, w_att,
                                    *, b_blk=None):
    """x_nchw: (N, C, H, W) -> (N, F, H, W)."""
    N, C, H, W = x_nchw.shape
    MID = w_ch1.shape[0]
    F = w_att.shape[0]
    HW = H * W
    HW_pad = _round_up(HW, 128)            # lane-dense stores for arbitrary H, W
    # TODO(synk): add an H-tiled path (1-row halo for the 3x3 conv) for feature
    # maps whose (B_blk*C, H*W) block would overflow one VMEM block.

    if b_blk is None:
        b_blk = _pick_b_blk(N, C, F, HW_pad)
    n_pad = _round_up(N, b_blk)
    BC, BF, BM = b_blk * C, b_blk * F, b_blk * MID

    f32 = jnp.float32

    # ---- data: (N, C, H, W) -> (N*C, HWp), zero-padded batch + lanes
    x_flat = x_nchw.reshape(N * C, HW)
    if n_pad > N:
        x_flat = jnp.pad(x_flat, ((0, (n_pad - N) * C), (0, 0)))
    if HW_pad > HW:
        x_flat = jnp.pad(x_flat, ((0, 0), (0, HW_pad - HW)))

    # ---- block-diagonal weight tables (tiny, built once per call)
    eye = jnp.eye(b_blk, dtype=f32)
    w1_blk = jnp.kron(eye, w_ch1.astype(f32))                     # (BM, BC)
    w2_blk = jnp.kron(eye, w_ch2.astype(f32))                     # (BC, BM)
    pool = jnp.kron(eye, jnp.full((1, C), 1.0 / C, dtype=f32))    # (B_blk, BC)
    expand = jnp.kron(eye, jnp.ones((C, 1), dtype=f32))           # (BC, B_blk)
    watt_blk = jnp.kron(eye, w_att.astype(f32))                   # (BF, BC)
    taps = _build_tap_planes(H, W, HW_pad, w_sp1.astype(f32))     # (9, HWp)
    wsp2 = jnp.asarray(w_sp2, f32).reshape(1)                     # (1,) SMEM scalar

    kernel = functools.partial(_asf_kernel, H=H, W=W)

    grid_spec = pltpu.PrefetchScalarGridSpec(
        num_scalar_prefetch=0,
        grid=(n_pad // b_blk,),
        in_specs=[
            pl.BlockSpec((BC, HW_pad), lambda i: (i, 0)),          # x
            pl.BlockSpec((BM, BC), lambda i: (0, 0)),              # w1 block-diag
            pl.BlockSpec((BC, BM), lambda i: (0, 0)),              # w2 block-diag
            pl.BlockSpec((b_blk, BC), lambda i: (0, 0)),           # channel pool
            pl.BlockSpec((9, HW_pad), lambda i: (0, 0)),           # masked 3x3 taps
            pl.BlockSpec(memory_space=pltpu.MemorySpace.SMEM),     # w_sp2 scalar
            pl.BlockSpec((BC, b_blk), lambda i: (0, 0)),           # channel expand
            pl.BlockSpec((BF, BC), lambda i: (0, 0)),              # w_att block-diag
        ],
        out_specs=pl.BlockSpec((BF, HW_pad), lambda i: (i, 0)),
    )

    out_flat = pl.pallas_call(
        kernel,
        out_shape=jax.ShapeDtypeStruct((n_pad * F, HW_pad), x_nchw.dtype),
        grid_spec=grid_spec,
        # batch chunks are independent -> v7x can shard them across TensorCores
        compiler_params=pltpu.CompilerParams(dimension_semantics=("parallel",)),
    )(x_flat, w1_blk, w2_blk, pool, taps, wsp2, expand, watt_blk)

    return out_flat[:N * F, :HW].reshape(N, F, H, W)


def reference_forward(x, w_ch1, w_ch2, w_sp1, w_sp2, w_att):
    """Pure-JAX reference (NCHW), literal translation of the PyTorch module."""
    N, C, H, W = x.shape
    cm = jnp.mean(x, axis=(2, 3))                                     # (N, C)
    h = jnp.maximum(jnp.einsum('mc,nc->nm', w_ch1, cm), 0.0)          # (N, MID)
    ca = _sigmoid(jnp.einsum('cm,nm->nc', w_ch2, h))                  # (N, C)
    gx = x + ca[:, :, None, None]                                     # (N, C, H, W)

    m = jnp.mean(gx, axis=1, keepdims=True)                           # (N, 1, H, W)
    mp = jnp.pad(m, ((0, 0), (0, 0), (1, 1), (1, 1)))
    conv = jnp.zeros_like(m)
    for ky in range(3):
        for kx in range(3):
            conv = conv + w_sp1[ky, kx] * mp[:, :, ky:ky + H, kx:kx + W]
    s = _sigmoid(jnp.maximum(conv, 0.0) * w_sp2)
    gx2 = gx + s

    return _sigmoid(jnp.einsum('fc,nchw->nfhw', w_att, gx2))          # (N, F, H, W)


if __name__ == "__main__":
    key = jax.random.PRNGKey(0)
    N, C, H, W = 2, 4, 16, 16
    MID, F = 8, 4            # mid_channels, num_features

    k = jax.random.split(key, 6)
    x = jax.random.normal(k[0], (N, C, H, W), jnp.float32)
    w_ch1 = jax.random.normal(k[1], (MID, C), jnp.float32) * 0.5
    w_ch2 = jax.random.normal(k[2], (C, MID), jnp.float32) * 0.5
    w_sp1 = jax.random.normal(k[3], (3, 3), jnp.float32) * 0.5
    w_sp2 = jax.random.normal(k[4], (), jnp.float32) * 0.5
    w_att = jax.random.normal(k[5], (F, C), jnp.float32) * 0.5

    out = jax.block_until_ready(
        scale_channel_spatial_attention(x, w_ch1, w_ch2, w_sp1, w_sp2, w_att))
    ref = jax.block_until_ready(
        reference_forward(x, w_ch1, w_ch2, w_sp1, w_sp2, w_att))

    assert out.shape == (N, F, H, W), out.shape
    err = float(jnp.max(jnp.abs(out - ref)))
    assert err < 1e-4, f"max abs err {err}"
    print("KERNEL_OK")
</pallas_src>

<mosaic_0001>
module attributes {stable_mosaic.version = 11 : i64} {
  func.func @_asf_kernel(%arg0: i32, %arg1: memref<8x256xf32, #tpu.memory_space<vmem>>, %arg2: memref<16x8xf32, #tpu.memory_space<vmem>>, %arg3: memref<8x16xf32, #tpu.memory_space<vmem>>, %arg4: memref<2x8xf32, #tpu.memory_space<vmem>>, %arg5: memref<9x256xf32, #tpu.memory_space<vmem>>, %arg6: memref<1xf32, #tpu.memory_space<smem>>, %arg7: memref<8x2xf32, #tpu.memory_space<vmem>>, %arg8: memref<8x8xf32, #tpu.memory_space<vmem>>, %arg9: memref<8x256xf32, #tpu.memory_space<vmem>>) attributes {dimension_semantics = [#tpu.dimension_semantics<parallel>], iteration_bounds = array<i64: 1>, scalar_prefetch = 0 : i64, scratch_operands = 0 : i64, tpu.core_type = #tpu.core_type<tc>, window_params = [{transform_indices = @transform_0, window_bounds = array<i64: 8, 256>}, {pipeline_mode = #tpu.pipeline_mode<synchronous>, transform_indices = @transform_1, window_bounds = array<i64: 16, 8>}, {pipeline_mode = #tpu.pipeline_mode<synchronous>, transform_indices = @transform_2, window_bounds = array<i64: 8, 16>}, {pipeline_mode = #tpu.pipeline_mode<synchronous>, transform_indices = @transform_3, window_bounds = array<i64: 2, 8>}, {pipeline_mode = #tpu.pipeline_mode<synchronous>, transform_indices = @transform_4, window_bounds = array<i64: 9, 256>}, {transform_indices = @transform_5, window_bounds = array<i64: 1>}, {pipeline_mode = #tpu.pipeline_mode<synchronous>, transform_indices = @transform_6, window_bounds = array<i64: 8, 2>}, {pipeline_mode = #tpu.pipeline_mode<synchronous>, transform_indices = @transform_7, window_bounds = array<i64: 8, 8>}, {transform_indices = @transform_8, window_bounds = array<i64: 8, 256>}]} {
    %c0 = arith.constant 0 : index
    %c0_0 = arith.constant 0 : index
    %0 = vector.load %arg1[%c0, %c0_0] : memref<8x256xf32, #tpu.memory_space<vmem>>, vector<8x256xf32>
    %c0_1 = arith.constant 0 : index
    %c0_2 = arith.constant 0 : index
    %1 = vector.load %arg2[%c0_1, %c0_2] : memref<16x8xf32, #tpu.memory_space<vmem>>, vector<16x8xf32>
    %cst = arith.constant dense<0.000000e+00> : vector<16x256xf32>
    %2 = tpu.matmul %1, %0, %cst {dimension_numbers = #tpu.dot_dimension_numbers<[1], [0], [0], [1], [0, 0, 1, 1], [], []>} : vector<16x8xf32>, vector<8x256xf32>, vector<16x256xf32> -> vector<16x256xf32>
    %cst_3 = arith.constant dense<0.000000e+00> : vector<16xf32>
    %3 = vector.multi_reduction <add>, %2, %cst_3 [1] : vector<16x256xf32> to vector<16xf32>
    %4 = vector.shape_cast %3 : vector<16xf32> to vector<16x1xf32>
    %cst_4 = arith.constant 3.906250e-03 : f32
    %5 = vector.broadcast %cst_4 : f32 to vector<16x1xf32>
    %6 = arith.mulf %4, %5 : vector<16x1xf32>
    %cst_5 = arith.constant 0.000000e+00 : f32
    %7 = vector.broadcast %cst_5 : f32 to vector<16x1xf32>
    %8 = arith.maximumf %6, %7 : vector<16x1xf32>
    %9 = vector.shape_cast %8 : vector<16x1xf32> to vector<16x1xf32>
    %10 = vector.broadcast %9 : vector<16x1xf32> to vector<16x256xf32>
    %c0_6 = arith.constant 0 : index
    %c0_7 = arith.constant 0 : index
    %11 = vector.load %arg3[%c0_6, %c0_7] : memref<8x16xf32, #tpu.memory_space<vmem>>, vector<8x16xf32>
    %cst_8 = arith.constant dense<0.000000e+00> : vector<8x256xf32>
    %12 = tpu.matmul %11, %10, %cst_8 {dimension_numbers = #tpu.dot_dimension_numbers<[1], [0], [0], [1], [0, 0, 1, 1], [], []>} : vector<8x16xf32>, vector<16x256xf32>, vector<8x256xf32> -> vector<8x256xf32>
    %cst_9 = arith.constant 5.000000e-01 : f32
    %13 = vector.broadcast %cst_9 : f32 to vector<8x256xf32>
    %14 = arith.mulf %13, %12 : vector<8x256xf32>
    %15 = math.tanh %14 : vector<8x256xf32>
    %cst_10 = arith.constant 1.000000e+00 : f32
    %16 = vector.broadcast %cst_10 : f32 to vector<8x256xf32>
    %17 = arith.addf %15, %16 : vector<8x256xf32>
    %cst_11 = arith.constant 5.000000e-01 : f32
    %18 = vector.broadcast %cst_11 : f32 to vector<8x256xf32>
    %19 = arith.mulf %18, %17 : vector<8x256xf32>
    %20 = arith.addf %0, %19 : vector<8x256xf32>
    %c0_12 = arith.constant 0 : index
    %c0_13 = arith.constant 0 : index
    %21 = vector.load %arg4[%c0_12, %c0_13] : memref<2x8xf32, #tpu.memory_space<vmem>>, vector<2x8xf32>
    %cst_14 = arith.constant dense<0.000000e+00> : vector<2x256xf32>
    %22 = tpu.matmul %21, %20, %cst_14 {dimension_numbers = #tpu.dot_dimension_numbers<[1], [0], [0], [1], [0, 0, 1, 1], [], []>} : vector<2x8xf32>, vector<8x256xf32>, vector<2x256xf32> -> vector<2x256xf32>
    %c0_15 = arith.constant 0 : index
    %c0_16 = arith.constant 0 : index
    %23 = vector.load %arg5[%c0_15, %c0_16] : memref<9x256xf32, #tpu.memory_space<vmem>>, vector<9x256xf32>
    %cst_17 = arith.constant 0.000000e+00 : f32
    %24 = vector.broadcast %cst_17 : f32 to vector<2x256xf32>
    %c17_i32 = arith.constant 17 : i32
    %25 = tpu.dynamic_rotate %22 by %c17_i32 dim 1 : vector<2x256xf32>, i32 -> vector<2x256xf32>
    %26 = vector.extract_strided_slice %23 {offsets = [0, 0], sizes = [1, 256], strides = [1, 1]} : vector<9x256xf32> to vector<1x256xf32>
    %27 = vector.broadcast %26 : vector<1x256xf32> to vector<2x256xf32>
    %28 = arith.mulf %25, %27 : vector<2x256xf32>
    %29 = arith.addf %24, %28 : vector<2x256xf32>
    %c16_i32 = arith.constant 16 : i32
    %30 = tpu.dynamic_rotate %22 by %c16_i32 dim 1 : vector<2x256xf32>, i32 -> vector<2x256xf32>
    %31 = vector.extract_strided_slice %23 {offsets = [1, 0], sizes = [1, 256], strides = [1, 1]} : vector<9x256xf32> to vector<1x256xf32>
    %32 = vector.broadcast %31 : vector<1x256xf32> to vector<2x256xf32>
    %33 = arith.mulf %30, %32 : vector<2x256xf32>
    %34 = arith.addf %29, %33 : vector<2x256xf32>
    %c15_i32 = arith.constant 15 : i32
    %35 = tpu.dynamic_rotate %22 by %c15_i32 dim 1 : vector<2x256xf32>, i32 -> vector<2x256xf32>
    %36 = vector.extract_strided_slice %23 {offsets = [2, 0], sizes = [1, 256], strides = [1, 1]} : vector<9x256xf32> to vector<1x256xf32>
    %37 = vector.broadcast %36 : vector<1x256xf32> to vector<2x256xf32>
    %38 = arith.mulf %35, %37 : vector<2x256xf32>
    %39 = arith.addf %34, %38 : vector<2x256xf32>
    %c1_i32 = arith.constant 1 : i32
    %40 = tpu.dynamic_rotate %22 by %c1_i32 dim 1 : vector<2x256xf32>, i32 -> vector<2x256xf32>
    %41 = vector.extract_strided_slice %23 {offsets = [3, 0], sizes = [1, 256], strides = [1, 1]} : vector<9x256xf32> to vector<1x256xf32>
    %42 = vector.broadcast %41 : vector<1x256xf32> to vector<2x256xf32>
    %43 = arith.mulf %40, %42 : vector<2x256xf32>
    %44 = arith.addf %39, %43 : vector<2x256xf32>
    %45 = vector.extract_strided_slice %23 {offsets = [4, 0], sizes = [1, 256], strides = [1, 1]} : vector<9x256xf32> to vector<1x256xf32>
    %46 = vector.broadcast %45 : vector<1x256xf32> to vector<2x256xf32>
    %47 = arith.mulf %22, %46 : vector<2x256xf32>
    %48 = arith.addf %44, %47 : vector<2x256xf32>
    %c255_i32 = arith.constant 255 : i32
    %49 = tpu.dynamic_rotate %22 by %c255_i32 dim 1 : vector<2x256xf32>, i32 -> vector<2x256xf32>
    %50 = vector.extract_strided_slice %23 {offsets = [5, 0], sizes = [1, 256], strides = [1, 1]} : vector<9x256xf32> to vector<1x256xf32>
    %51 = vector.broadcast %50 : vector<1x256xf32> to vector<2x256xf32>
    %52 = arith.mulf %49, %51 : vector<2x256xf32>
    %53 = arith.addf %48, %52 : vector<2x256xf32>
    %c241_i32 = arith.constant 241 : i32
    %54 = tpu.dynamic_rotate %22 by %c241_i32 dim 1 : vector<2x256xf32>, i32 -> vector<2x256xf32>
    %55 = vector.extract_strided_slice %23 {offsets = [6, 0], sizes = [1, 256], strides = [1, 1]} : vector<9x256xf32> to vector<1x256xf32>
    %56 = vector.broadcast %55 : vector<1x256xf32> to vector<2x256xf32>
    %57 = arith.mulf %54, %56 : vector<2x256xf32>
    %58 = arith.addf %53, %57 : vector<2x256xf32>
    %c240_i32 = arith.constant 240 : i32
    %59 = tpu.dynamic_rotate %22 by %c240_i32 dim 1 : vector<2x256xf32>, i32 -> vector<2x256xf32>
    %60 = vector.extract_strided_slice %23 {offsets = [7, 0], sizes = [1, 256], strides = [1, 1]} : vector<9x256xf32> to vector<1x256xf32>
    %61 = vector.broadcast %60 : vector<1x256xf32> to vector<2x256xf32>
    %62 = arith.mulf %59, %61 : vector<2x256xf32>
    %63 = arith.addf %58, %62 : vector<2x256xf32>
    %c239_i32 = arith.constant 239 : i32
    %64 = tpu.dynamic_rotate %22 by %c239_i32 dim 1 : vector<2x256xf32>, i32 -> vector<2x256xf32>
    %65 = vector.extract_strided_slice %23 {offsets = [8, 0], sizes = [1, 256], strides = [1, 1]} : vector<9x256xf32> to vector<1x256xf32>
    %66 = vector.broadcast %65 : vector<1x256xf32> to vector<2x256xf32>
    %67 = arith.mulf %64, %66 : vector<2x256xf32>
    %68 = arith.addf %63, %67 : vector<2x256xf32>
    %cst_18 = arith.constant 0.000000e+00 : f32
    %69 = vector.broadcast %cst_18 : f32 to vector<2x256xf32>
    %70 = arith.maximumf %68, %69 : vector<2x256xf32>
    %c0_19 = arith.constant 0 : index
    %71 = memref.load %arg6[%c0_19] : memref<1xf32, #tpu.memory_space<smem>>
    %72 = vector.broadcast %71 : f32 to vector<2x256xf32>
    %73 = arith.mulf %70, %72 : vector<2x256xf32>
    %cst_20 = arith.constant 5.000000e-01 : f32
    %74 = vector.broadcast %cst_20 : f32 to vector<2x256xf32>
    %75 = arith.mulf %74, %73 : vector<2x256xf32>
    %76 = math.tanh %75 : vector<2x256xf32>
    %cst_21 = arith.constant 1.000000e+00 : f32
    %77 = vector.broadcast %cst_21 : f32 to vector<2x256xf32>
    %78 = arith.addf %76, %77 : vector<2x256xf32>
    %cst_22 = arith.constant 5.000000e-01 : f32
    %79 = vector.broadcast %cst_22 : f32 to vector<2x256xf32>
    %80 = arith.mulf %79, %78 : vector<2x256xf32>
    %c0_23 = arith.constant 0 : index
    %c0_24 = arith.constant 0 : index
    %81 = vector.load %arg7[%c0_23, %c0_24] : memref<8x2xf32, #tpu.memory_space<vmem>>, vector<8x2xf32>
    %cst_25 = arith.constant dense<0.000000e+00> : vector<8x256xf32>
    %82 = tpu.matmul %81, %80, %cst_25 {dimension_numbers = #tpu.dot_dimension_numbers<[1], [0], [0], [1], [0, 0, 1, 1], [], []>} : vector<8x2xf32>, vector<2x256xf32>, vector<8x256xf32> -> vector<8x256xf32>
    %83 = arith.addf %20, %82 : vector<8x256xf32>
    %c0_26 = arith.constant 0 : index
    %c0_27 = arith.constant 0 : index
    %84 = vector.load %arg8[%c0_26, %c0_27] : memref<8x8xf32, #tpu.memory_space<vmem>>, vector<8x8xf32>
    %cst_28 = arith.constant dense<0.000000e+00> : vector<8x256xf32>
    %85 = tpu.matmul %84, %83, %cst_28 {dimension_numbers = #tpu.dot_dimension_numbers<[1], [0], [0], [1], [0, 0, 1, 1], [], []>} : vector<8x8xf32>, vector<8x256xf32>, vector<8x256xf32> -> vector<8x256xf32>
    %cst_29 = arith.constant 5.000000e-01 : f32
    %86 = vector.broadcast %cst_29 : f32 to vector<8x256xf32>
    %87 = arith.mulf %86, %85 : vector<8x256xf32>
    %88 = math.tanh %87 : vector<8x256xf32>
    %cst_30 = arith.constant 1.000000e+00 : f32
    %89 = vector.broadcast %cst_30 : f32 to vector<8x256xf32>
    %90 = arith.addf %88, %89 : vector<8x256xf32>
    %cst_31 = arith.constant 5.000000e-01 : f32
    %91 = vector.broadcast %cst_31 : f32 to vector<8x256xf32>
    %92 = arith.mulf %91, %90 : vector<8x256xf32>
    %c0_32 = arith.constant 0 : index
    %c0_33 = arith.constant 0 : index
    %93 = vector.load %arg9[%c0_32, %c0_33] : memref<8x256xf32, #tpu.memory_space<vmem>>, vector<8x256xf32>
    tpu.vector_store %arg9[%c0_32, %c0_33], %92 {strides = array<i32>} : memref<8x256xf32, #tpu.memory_space<vmem>>, vector<8x256xf32>,
    return
  }
  func.func @transform_0(%arg0: i32) -> (i32, i32) {
    %c0_i32 = arith.constant 0 : i32
    %c0_i32_0 = arith.constant 0 : i32
    return %arg0, %c0_i32 : i32, i32
  }
  func.func @transform_1(%arg0: i32) -> (i32, i32) {
    %c0_i32 = arith.constant 0 : i32
    %c0_i32_0 = arith.constant 0 : i32
    %c0_i32_1 = arith.constant 0 : i32
    return %c0_i32, %c0_i32_0 : i32, i32
  }
  func.func @transform_2(%arg0: i32) -> (i32, i32) {
    %c0_i32 = arith.constant 0 : i32
    %c0_i32_0 = arith.constant 0 : i32
    %c0_i32_1 = arith.constant 0 : i32
    return %c0_i32, %c0_i32_0 : i32, i32
  }
  func.func @transform_3(%arg0: i32) -> (i32, i32) {
    %c0_i32 = arith.constant 0 : i32
    %c0_i32_0 = arith.constant 0 : i32
    %c0_i32_1 = arith.constant 0 : i32
    return %c0_i32, %c0_i32_0 : i32, i32
  }
  func.func @transform_4(%arg0: i32) -> (i32, i32) {
    %c0_i32 = arith.constant 0 : i32
    %c0_i32_0 = arith.constant 0 : i32
    %c0_i32_1 = arith.constant 0 : i32
    return %c0_i32, %c0_i32_0 : i32, i32
  }
  func.func @transform_5(%arg0: i32) -> i32 {
    %c0_i32 = arith.constant 0 : i32
    %c0_i32_0 = arith.constant 0 : i32
    return %c0_i32 : i32
  }
  func.func @transform_6(%arg0: i32) -> (i32, i32) {
    %c0_i32 = arith.constant 0 : i32
    %c0_i32_0 = arith.constant 0 : i32
    %c0_i32_1 = arith.constant 0 : i32
    return %c0_i32, %c0_i32_0 : i32, i32
  }
  func.func @transform_7(%arg0: i32) -> (i32, i32) {
    %c0_i32 = arith.constant 0 : i32
    %c0_i32_0 = arith.constant 0 : i32
    %c0_i32_1 = arith.constant 0 : i32
    return %c0_i32, %c0_i32_0 : i32, i32
  }
  func.func @transform_8(%arg0: i32) -> (i32, i32) {
    %c0_i32 = arith.constant 0 : i32
    %c0_i32_0 = arith.constant 0 : i32
    return %arg0, %c0_i32 : i32, i32
  }
}

</mosaic_0001>

<llo_original>
// kernel: tpu_custom_call.1
$region0: #{tpu_custom_call.1}
  #allocation0 [shape = 'u32[]', space=smem, size = 0x4, offset = 0x4, fixed_abs, tag = 'smem constant byte address 0x4 - core index']
  #allocation1 [shape = 'u32[144,128]{1,0:T(1,128)}', space=vmem, size = 0x12000, scoped, tag = 'internal scratch']
  #allocation2 [shape = 'f32[1]{0:T(128)S(6)}', space=smem, size = 0x200, scoped, tag = 'scoped memory for tpu_custom_call.1']
  %s0 = inlined_call_operand.vmem [shape: f32[8,256], index: 0, kind: input, shape index: {}]
  %s1 = inlined_call_operand.vmem [shape: f32[16,8], index: 1, kind: input, shape index: {}]
  %s2 = inlined_call_operand.hbm [shape: f32[8,16], index: 2, kind: input, shape index: {}]
  %s3 = inlined_call_operand.hbm [shape: f32[2,8], index: 3, kind: input, shape index: {}]
  %s4 = inlined_call_operand.vmem [shape: f32[9,256], index: 4, kind: input, shape index: {}]
  %s5 = inlined_call_operand.<no memory space> [shape: f32[1], index: 5, kind: input, shape index: {}]
  %s6 = inlined_call_operand.vmem [shape: f32[8,2], index: 6, kind: input, shape index: {}]
  %s7 = inlined_call_operand.vmem [shape: f32[8,8], index: 7, kind: input, shape index: {}]
  %s8 = inlined_call_operand.hbm [shape: f32[8,256], index: 8, kind: output, shape index: {}]
  %s9 = sld [smem:[#allocation0]]
  $region50: #{tpu_custom_call.1} parent=0
    _
  %s11 = ssub.s32 1, %s9
  %s12 = scalar_select 0, %s11, %s9
  %13 = sst [smem:[#allocation2]] %s5
  $region1: #{tpu_custom_call.1} parent=0
    #allocation3 [shape = 'u8[4096]{0}', space=vmem, size = 0x1000, scoped, tag = 'input window, operand 2, single buffered']
    #allocation4 [shape = 's32[1]{0}', space=sflag, size = 0x4, scoped, tag = 'scoped memory for tpu_custom_call.1']
    #allocation5 [shape = 's32[1]{0}', space=sflag, size = 0x4, scoped, tag = 'scoped memory for tpu_custom_call.1']
    #allocation6 [shape = 'u8[1024]{0}', space=vmem, size = 0x400, scoped, tag = 'input window, operand 3, single buffered']
    #allocation7 [shape = 's32[1]{0}', space=sflag, size = 0x4, scoped, tag = 'scoped memory for tpu_custom_call.1']
    #allocation8 [shape = 'u8[8192]{0}', space=vmem, size = 0x2000, scoped, tag = 'output window, operand 0, single buffered']
    %14 = vsyncpa [#allocation4], 0
    %15 = vsyncpa [#allocation7], 0
    %16 = vsyncpa [#allocation5], 0
    // Predicated region
    $region2: #{tpu_custom_call.1} parent=1 // pred_check
      _
    $region3: #{tpu_custom_call.1} parent=1 // pred_check_branch
      %18 = sbr.rel (0) target = $region5
    $region4: #{tpu_custom_call.1} parent=1 // pred_region
      _
    $region5: #{tpu_custom_call.1} parent=1 // pred_fallthru
      _
    // Predicated region
    $region6: #{tpu_custom_call.1} parent=1 // pred_check
      _
    $region7: #{tpu_custom_call.1} parent=1 // pred_check_branch
      %20 = sbr.rel (0) target = $region9
    $region8: #{tpu_custom_call.1} parent=1 // pred_region
      _
    $region9: #{tpu_custom_call.1} parent=1 // pred_fallthru
      _
    // Predicated region
    $region10: #{tpu_custom_call.1} parent=1 // pred_check
      _
    $region11: #{tpu_custom_call.1} parent=1 // pred_check_branch
      %22 = sbr.rel (0) target = $region13
    $region12: #{tpu_custom_call.1} parent=1 // pred_region
      %s24 = ssub.s32 128, 128
      %25 = vsyncadd [#allocation4], %s24
      %s27 = sshll.u32 [#allocation3], 4
      %s28 = int_to_ptr.vmem [resolvable:$true] %s27
      %30 = dma.hbm_to_vmem [thread:$0]  %s2, 128, %s28, [#allocation4]
    $region13: #{tpu_custom_call.1} parent=1 // pred_fallthru
      _
    // Predicated region
    $region14: #{tpu_custom_call.1} parent=1 // pred_check
      _
    $region15: #{tpu_custom_call.1} parent=1 // pred_check_branch
      %32 = sbr.rel (0) target = $region17
    $region16: #{tpu_custom_call.1} parent=1 // pred_region
      %s34 = ssub.s32 32, 32
      %35 = vsyncadd [#allocation7], %s34
      %s37 = sshll.u32 [#allocation6], 4
      %s38 = int_to_ptr.vmem [resolvable:$true] %s37
      %40 = dma.hbm_to_vmem [thread:$0]  %s3, 32, %s38, [#allocation7]
    $region17: #{tpu_custom_call.1} parent=1 // pred_fallthru
      _
    // Predicated region
    $region18: #{tpu_custom_call.1} parent=1 // pred_check
      _
    $region19: #{tpu_custom_call.1} parent=1 // pred_check_branch
      %42 = sbr.rel (0) target = $region21
    $region20: #{tpu_custom_call.1} parent=1 // pred_region
      _
    $region21: #{tpu_custom_call.1} parent=1 // pred_fallthru
      _
    // Predicated region
    $region22: #{tpu_custom_call.1} parent=1 // pred_check
      _
    $region23: #{tpu_custom_call.1} parent=1 // pred_check_branch
      %44 = sbr.rel (0) target = $region25
    $region24: #{tpu_custom_call.1} parent=1 // pred_region
      _
    $region25: #{tpu_custom_call.1} parent=1 // pred_fallthru
      _
    // Predicated region
    $region26: #{tpu_custom_call.1} parent=1 // pred_check
      _
    $region27: #{tpu_custom_call.1} parent=1 // pred_check_branch
      %46 = sbr.rel (0) target = $region29
    $region28: #{tpu_custom_call.1} parent=1 // pred_region
      _
    $region29: #{tpu_custom_call.1} parent=1 // pred_fallthru
      _
    // Predicated region
    $region30: #{tpu_custom_call.1} parent=1 // pred_check
      _
    $region31: #{tpu_custom_call.1} parent=1 // pred_check_branch
      %48 = sbr.rel (0) target = $region33
    $region32: #{tpu_custom_call.1} parent=1 // pred_region
      _
    $region33: #{tpu_custom_call.1} parent=1 // pred_fallthru
      _
    // Predicated region
    $region34: #{tpu_custom_call.1} parent=1 // pred_check
      _
    $region35: #{tpu_custom_call.1} parent=1 // pred_check_branch
      %50 = sbr.rel (0) target = $region37
    $region36: #{tpu_custom_call.1} parent=1 // pred_region
      %51 = dma.done [#allocation4], 128
    $region37: #{tpu_custom_call.1} parent=1 // pred_fallthru
      _
    // Predicated region
    $region38: #{tpu_custom_call.1} parent=1 // pred_check
      _
    $region39: #{tpu_custom_call.1} parent=1 // pred_check_branch
      %53 = sbr.rel (0) target = $region41
    $region40: #{tpu_custom_call.1} parent=1 // pred_region
      %54 = dma.done [#allocation7], 32
    $region41: #{tpu_custom_call.1} parent=1 // pred_fallthru
      _
    %v55 = vld [vmem:[%s0] sm:$0xff]
    %v56 = vld [vmem:[%s0 + $0x8] sm:$0xff]
    %v57 = vld [vmem:[%s1] sm:$0xff]
    %v58 = vld [vmem:[%s1 + $0x8] sm:$0xff]
    %vm59 = vcmask 64512
    %v61 = vsel %vm59, %v57, 0
    %v64 = vsel %vm59, %v58, 0
    %66 = vmatprep.subr.mxu0 %v56
    %67 = vmatpush1.msra.mxu0 %v55
    %68 = vmatprep.subr.mxu0 0.0
    %69 = vmatpush1.msra.mxu0 0.0
    %70 = vmatprep.subr.mxu0 0.0
    %71 = vmatpush1.msra.mxu0 0.0
    %72 = vmatprep.subr.mxu0 0.0
    %73 = vmatpush1.msra.mxu0 0.0
    %74 = vmatprep.subr.mxu0 0.0
    %75 = vmatpush1.msra.mxu0 0.0
    %76 = vmatprep.subr.mxu0 0.0
    %77 = vmatpush1.msra.mxu0 0.0
    %78 = vmatprep.subr.mxu0 0.0
    %79 = vmatpush1.msra.mxu0 0.0
    %80 = vmatprep.subr.mxu0 0.0
    %81 = vmatpush1.msra.mxu0 0.0
    %82 = vmatprep.subr.mxu0 0.0
    %83 = vmatpush1.msra.mxu0 0.0
    %84 = vmatprep.subr.mxu0 0.0
    %85 = vmatpush1.msra.mxu0 0.0
    %86 = vmatprep.subr.mxu0 0.0
    %87 = vmatpush1.msra.mxu0 0.0
    %88 = vmatprep.subr.mxu0 0.0
    %89 = vmatpush1.msra.mxu0 0.0
    %90 = vmatprep.subr.mxu0 0.0
    %91 = vmatpush1.msra.mxu0 0.0
    %92 = vmatprep.subr.mxu0 0.0
    %93 = vmatpush1.msra.mxu0 0.0
    %94 = vmatprep.subr.mxu0 0.0
    %95 = vmatpush1.msra.mxu0 0.0
    %96 = vmatprep.subr.mxu0 0.0
    %97 = vmatpush1.msra.mxu0 0.0
    %98 = vmatprep.subr.mxu0 0.0
    %99 = vmatpush1.msra.mxu0 0.0
    %100 = vmatprep.subr.mxu0 0.0
    %101 = vmatpush1.msra.mxu0 0.0
    %102 = vmatprep.subr.mxu0 0.0
    %103 = vmatpush1.msra.mxu0 0.0
    %104 = vmatprep.subr.mxu0 0.0
    %105 = vmatpush1.msra.mxu0 0.0
    %106 = vmatprep.subr.mxu0 0.0
    %107 = vmatpush1.msra.mxu0 0.0
    %108 = vmatprep.subr.mxu0 0.0
    %109 = vmatpush1.msra.mxu0 0.0
    %110 = vmatprep.subr.mxu0 0.0
    %111 = vmatpush1.msra.mxu0 0.0
    %112 = vmatprep.subr.mxu0 0.0
    %113 = vmatpush1.msra.mxu0 0.0
    %114 = vmatprep.subr.mxu0 0.0
    %115 = vmatpush1.msra.mxu0 0.0
    %116 = vmatprep.subr.mxu0 0.0
    %117 = vmatpush1.msra.mxu0 0.0
    %118 = vmatprep.subr.mxu0 0.0
    %119 = vmatpush1.msra.mxu0 0.0
    %120 = vmatprep.subr.mxu0 0.0
    %121 = vmatpush1.msra.mxu0 0.0
    %122 = vmatprep.subr.mxu0 0.0
    %123 = vmatpush1.msra.mxu0 0.0
    %124 = vmatprep.subr.mxu0 0.0
    %125 = vmatpush1.msra.mxu0 0.0
    %126 = vmatprep.subr.mxu0 0.0
    %127 = vmatpush1.msra.mxu0 0.0
    %128 = vmatprep.subr.mxu0 0.0
    %129 = vmatpush1.msra.mxu0 0.0
    %130 = vmatprep.mubr.f32.mxu0 0.0
    %131 = vmatmul.mubr.f32.gmra.mrb[0].mxu0 %v61
    %v132 = vpop.f32.mrb[0].mxu0
    %v133 = vadd.f32 0.0, %v132
    %v134 = vpop.f32.mrb[0].mxu0
    %v135 = vadd.f32 0.0, %v134
    %136 = vmatprep.mubr.f32.mxu0 0.0
    %137 = vmatmul.mubr.f32.gmra.mrb[0].mxu0 %v64
    %v138 = vpop.f32.mrb[0].mxu0
    %v139 = vadd.f32 0.0, %v138
    %v140 = vpop.f32.mrb[0].mxu0
    %v141 = vadd.f32 0.0, %v140
    %142 = vdwg.mxu0
    %v143 = vadd.f32 %v133, %v135
    %144 = vadd.xlane.f32.xlu0 %v143
    %v145 = vpop.xlane.xlu0 %144
    %v146 = vadd.f32 %v139, %v141
    %147 = vadd.xlane.f32.xlu0 %v146
    %v148 = vpop.xlane.xlu0 %147
    %v149 = vmul.f32 %v145, 0.00390625
    %v150 = vmul.f32 %v148, 0.00390625
    %v151 = vmax.f32 %v149, 0.0
    %v152 = vmax.f32 %v150, 0.0
    %v153 = vld [vmem:[#allocation3] sm:$0xff]
    %vm154 = vcmask 130048
    %v156 = vsel %vm154, %v153, 0
    %158 = vmatprep.subr.mxu0 %v151
    %159 = vmatpush1.msra.mxu0 %v151
    %160 = vmatprep.subr.mxu0 %v152
    %161 = vmatpush1.msra.mxu0 %v152
    %162 = vmatprep.subr.mxu0 0.0
    %163 = vmatpush1.msra.mxu0 0.0
    %164 = vmatprep.subr.mxu0 0.0
    %165 = vmatpush1.msra.mxu0 0.0
    %166 = vmatprep.subr.mxu0 0.0
    %167 = vmatpush1.msra.mxu0 0.0
    %168 = vmatprep.subr.mxu0 0.0
    %169 = vmatpush1.msra.mxu0 0.0
    %170 = vmatprep.subr.mxu0 0.0
    %171 = vmatpush1.msra.mxu0 0.0
    %172 = vmatprep.subr.mxu0 0.0
    %173 = vmatpush1.msra.mxu0 0.0
    %174 = vmatprep.subr.mxu0 0.0
    %175 = vmatpush1.msra.mxu0 0.0
    %176 = vmatprep.subr.mxu0 0.0
    %177 = vmatpush1.msra.mxu0 0.0
    %178 = vmatprep.subr.mxu0 0.0
    %179 = vmatpush1.msra.mxu0 0.0
    %180 = vmatprep.subr.mxu0 0.0
    %181 = vmatpush1.msra.mxu0 0.0
    %182 = vmatprep.subr.mxu0 0.0
    %183 = vmatpush1.msra.mxu0 0.0
    %184 = vmatprep.subr.mxu0 0.0
    %185 = vmatpush1.msra.mxu0 0.0
    %186 = vmatprep.subr.mxu0 0.0
    %187 = vmatpush1.msra.mxu0 0.0
    %188 = vmatprep.subr.mxu0 0.0
    %189 = vmatpush1.msra.mxu0 0.0
    %190 = vmatprep.subr.mxu0 0.0
    %191 = vmatpush1.msra.mxu0 0.0
    %192 = vmatprep.subr.mxu0 0.0
    %193 = vmatpush1.msra.mxu0 0.0
    %194 = vmatprep.subr.mxu0 0.0
    %195 = vmatpush1.msra.mxu0 0.0
    %196 = vmatprep.subr.mxu0 0.0
    %197 = vmatpush1.msra.mxu0 0.0
    %198 = vmatprep.subr.mxu0 0.0
    %199 = vmatpush1.msra.mxu0 0.0
    %200 = vmatprep.subr.mxu0 0.0
    %201 = vmatpush1.msra.mxu0 0.0
    %202 = vmatprep.subr.mxu0 0.0
    %203 = vmatpush1.msra.mxu0 0.0
    %204 = vmatprep.subr.mxu0 0.0
    %205 = vmatpush1.msra.mxu0 0.0
    %206 = vmatprep.subr.mxu0 0.0
    %207 = vmatpush1.msra.mxu0 0.0
    %208 = vmatprep.subr.mxu0 0.0
    %209 = vmatpush1.msra.mxu0 0.0
    %210 = vmatprep.subr.mxu0 0.0
    %211 = vmatpush1.msra.mxu0 0.0
    %212 = vmatprep.subr.mxu0 0.0
    %213 = vmatpush1.msra.mxu0 0.0
    %214 = vmatprep.subr.mxu0 0.0
    %215 = vmatpush1.msra.mxu0 0.0
    %216 = vmatprep.subr.mxu0 0.0
    %217 = vmatpush1.msra.mxu0 0.0
    %218 = vmatprep.subr.mxu0 0.0
    %219 = vmatpush1.msra.mxu0 0.0
    %220 = vmatprep.subr.mxu0 0.0
    %221 = vmatpush1.msra.mxu0 0.0
    %222 = vmatprep.mubr.f32.mxu0 0.0
    %223 = vmatmul.mubr.f32.gmra.mrb[0].mxu0 %v156
    %v224 = vpop.f32.mrb[0].mxu0
    %v225 = vadd.f32 0.0, %v224
    %v226 = vpop.f32.mrb[0].mxu0
    %v227 = vadd.f32 0.0, %v226
    %228 = vdwg.mxu0
    %v229 = vmul.f32 %v225, 0.5
    %v230 = vmul.f32 %v227, 0.5
    %v231 = vtanh.pop %v229
    %v232 = vtanh.pop %v230
    %v233 = vadd.f32 %v231, 1.0
    %v234 = vadd.f32 %v232, 1.0
    %v235 = vmul.f32 %v233, 0.5
    %v236 = vmul.f32 %v234, 0.5
    %v237 = vadd.f32 %v55, %v235
    %v238 = vadd.f32 %v56, %v236
    %v239 = vld [vmem:[#allocation6] sm:$0x3]
    %v241 = vsel %vm59, %v239, 0
    %243 = vmatprep.subr.mxu0 %v238
    %244 = vmatpush1.msra.mxu0 %v237
    %245 = vmatprep.subr.mxu0 0.0
    %246 = vmatpush1.msra.mxu0 0.0
    %247 = vmatprep.subr.mxu0 0.0
    %248 = vmatpush1.msra.mxu0 0.0
    %249 = vmatprep.subr.mxu0 0.0
    %250 = vmatpush1.msra.mxu0 0.0
    %251 = vmatprep.subr.mxu0 0.0
    %252 = vmatpush1.msra.mxu0 0.0
    %253 = vmatprep.subr.mxu0 0.0
    %254 = vmatpush1.msra.mxu0 0.0
    %255 = vmatprep.subr.mxu0 0.0
    %256 = vmatpush1.msra.mxu0 0.0
    %257 = vmatprep.subr.mxu0 0.0
    %258 = vmatpush1.msra.mxu0 0.0
    %259 = vmatprep.subr.mxu0 0.0
    %260 = vmatpush1.msra.mxu0 0.0
    %261 = vmatprep.subr.mxu0 0.0
    %262 = vmatpush1.msra.mxu0 0.0
    %263 = vmatprep.subr.mxu0 0.0
    %264 = vmatpush1.msra.mxu0 0.0
    %265 = vmatprep.subr.mxu0 0.0
    %266 = vmatpush1.msra.mxu0 0.0
    %267 = vmatprep.subr.mxu0 0.0
    %268 = vmatpush1.msra.mxu0 0.0
    %269 = vmatprep.subr.mxu0 0.0
    %270 = vmatpush1.msra.mxu0 0.0
    %271 = vmatprep.subr.mxu0 0.0
    %272 = vmatpush1.msra.mxu0 0.0
    %273 = vmatprep.subr.mxu0 0.0
    %274 = vmatpush1.msra.mxu0 0.0
    %275 = vmatprep.subr.mxu0 0.0
    %276 = vmatpush1.msra.mxu0 0.0
    %277 = vmatprep.subr.mxu0 0.0
    %278 = vmatpush1.msra.mxu0 0.0
    %279 = vmatprep.subr.mxu0 0.0
    %280 = vmatpush1.msra.mxu0 0.0
    %281 = vmatprep.subr.mxu0 0.0
    %282 = vmatpush1.msra.mxu0 0.0
    %283 = vmatprep.subr.mxu0 0.0
    %284 = vmatpush1.msra.mxu0 0.0
    %285 = vmatprep.subr.mxu0 0.0
    %286 = vmatpush1.msra.mxu0 0.0
    %287 = vmatprep.subr.mxu0 0.0
    %288 = vmatpush1.msra.mxu0 0.0
    %289 = vmatprep.subr.mxu0 0.0
    %290 = vmatpush1.msra.mxu0 0.0
    %291 = vmatprep.subr.mxu0 0.0
    %292 = vmatpush1.msra.mxu0 0.0
    %293 = vmatprep.subr.mxu0 0.0
    %294 = vmatpush1.msra.mxu0 0.0
    %295 = vmatprep.subr.mxu0 0.0
    %296 = vmatpush1.msra.mxu0 0.0
    %297 = vmatprep.subr.mxu0 0.0
    %298 = vmatpush1.msra.mxu0 0.0
    %299 = vmatprep.subr.mxu0 0.0
    %300 = vmatpush1.msra.mxu0 0.0
    %301 = vmatprep.subr.mxu0 0.0
    %302 = vmatpush1.msra.mxu0 0.0
    %303 = vmatprep.subr.mxu0 0.0
    %304 = vmatpush1.msra.mxu0 0.0
    %305 = vmatprep.subr.mxu0 0.0
    %306 = vmatpush1.msra.mxu0 0.0
    %307 = vmatprep.mubr.f32.mxu0 0.0
    %308 = vmatmul.mubr.f32.gmra.mrb[0].mxu0 %v241
    %v309 = vpop.f32.mrb[0].mxu0
    %v310 = vadd.f32 0.0, %v309
    %v311 = vpop.f32.mrb[0].mxu0
    %v312 = vadd.f32 0.0, %v311
    %313 = vdwg.mxu0
    %v314 = vld [vmem:[%s4] sm:$0xff]
    %v315 = vld [vmem:[%s4 + $0x8] sm:$0xff]
    %v316 = vld [vmem:[%s4 + $0x10] sm:$0x1]
    %v317 = vld [vmem:[%s4 + $0x18] sm:$0x1]
    %318 = vrot.lane.b32.xlu0 %v310, 17
    %v319 = vpop.permute.xlu0 %318
    %320 = vrot.lane.b32.xlu0 %v312, 17
    %v321 = vpop.permute.xlu0 %320
    %v322 = vlaneseq
    %v323 = vand.u32 %v322, 127
    %vm324 = vcmp.lt.s32.totalorder %v323, 17
    %v325 = vsel %vm324, %v319, %v321
    %v326 = vsel %vm324, %v321, %v319
    %v327 = vlaneseq
    %v328 = vshrl.u32 %v327, 7
    %v329 = vsub.s32 0, %v328
    %v330 = vrot.slane %v314, %v329
    %v331 = vlaneseq
    %v332 = vshrl.u32 %v331, 7
    %v333 = vsub.s32 0, %v332
    %v334 = vrot.slane %v315, %v333
    %v335 = vmul.f32 %v326, %v330
    %v336 = vmul.f32 %v325, %v334
    %v337 = vadd.f32 %v335, 0.0
    %v338 = vadd.f32 %v336, 0.0
    %339 = vrot.lane.b32.xlu0 %v310, 16
    %v340 = vpop.permute.xlu0 %339
    %341 = vrot.lane.b32.xlu0 %v312, 16
    %v342 = vpop.permute.xlu0 %341
    %vm343 = vcmp.lt.s32.totalorder %v323, 16
    %v344 = vsel %vm343, %v340, %v342
    %v345 = vsel %vm343, %v342, %v340
    %v346 = vlaneseq
    %v347 = vshrl.u32 %v346, 7
    %v348 = vsub.s32 1, %v347
    %v349 = vrot.slane %v314, %v348
    %v350 = vlaneseq
    %v351 = vshrl.u32 %v350, 7
    %v352 = vsub.s32 1, %v351
    %v353 = vrot.slane %v315, %v352
    %v354 = vmul.f32 %v345, %v349
    %v355 = vmul.f32 %v344, %v353
    %v356 = vadd.f32 %v337, %v354
    %v357 = vadd.f32 %v338, %v355
    %358 = vrot.lane.b32.xlu0 %v310, 15
    %v359 = vpop.permute.xlu0 %358
    %360 = vrot.lane.b32.xlu0 %v312, 15
    %v361 = vpop.permute.xlu0 %360
    %vm362 = vcmp.lt.s32.totalorder %v323, 15
    %v363 = vsel %vm362, %v359, %v361
    %v364 = vsel %vm362, %v361, %v359
    %v365 = vlaneseq
    %v366 = vshrl.u32 %v365, 7
    %v367 = vsub.s32 2, %v366
    %v368 = vrot.slane %v314, %v367
    %v369 = vlaneseq
    %v370 = vshrl.u32 %v369, 7
    %v371 = vsub.s32 2, %v370
    %v372 = vrot.slane %v315, %v371
    %v373 = vmul.f32 %v364, %v368
    %v374 = vmul.f32 %v363, %v372
    %v375 = vadd.f32 %v356, %v373
    %v376 = vadd.f32 %v357, %v374
    %377 = vrot.lane.b32.xlu0 %v310, 1
    %v378 = vpop.permute.xlu0 %377
    %379 = vrot.lane.b32.xlu0 %v312, 1
    %v380 = vpop.permute.xlu0 %379
    %vm381 = vcmp.lt.s32.totalorder %v323, 1
    %v382 = vsel %vm381, %v378, %v380
    %v383 = vsel %vm381, %v380, %v378
    %v384 = vlaneseq
    %v385 = vshrl.u32 %v384, 7
    %v386 = vsub.s32 3, %v385
    %v387 = vrot.slane %v314, %v386
    %v388 = vlaneseq
    %v389 = vshrl.u32 %v388, 7
    %v390 = vsub.s32 3, %v389
    %v391 = vrot.slane %v315, %v390
    %v392 = vmul.f32 %v383, %v387
    %v393 = vmul.f32 %v382, %v391
    %v394 = vadd.f32 %v375, %v392
    %v395 = vadd.f32 %v376, %v393
    %v396 = vlaneseq
    %v397 = vshrl.u32 %v396, 7
    %v398 = vsub.s32 4, %v397
    %v399 = vrot.slane %v314, %v398
    %v400 = vlaneseq
    %v401 = vshrl.u32 %v400, 7
    %v402 = vsub.s32 4, %v401
    %v403 = vrot.slane %v315, %v402
    %v404 = vmul.f32 %v310, %v399
    %v405 = vmul.f32 %v312, %v403
    %v406 = vadd.f32 %v394, %v404
    %v407 = vadd.f32 %v395, %v405
    %408 = vrot.lane.b32.xlu0 %v310, 127
    %v409 = vpop.permute.xlu0 %408
    %410 = vrot.lane.b32.xlu0 %v312, 127
    %v411 = vpop.permute.xlu0 %410
    %vm412 = vcmp.lt.s32.totalorder %v323, 127
    %v413 = vsel %vm412, %v409, %v411
    %v414 = vsel %vm412, %v411, %v409
    %v415 = vlaneseq
    %v416 = vshrl.u32 %v415, 7
    %v417 = vsub.s32 5, %v416
    %v418 = vrot.slane %v314, %v417
    %v419 = vlaneseq
    %v420 = vshrl.u32 %v419, 7
    %v421 = vsub.s32 5, %v420
    %v422 = vrot.slane %v315, %v421
    %v423 = vmul.f32 %v413, %v418
    %v424 = vmul.f32 %v414, %v422
    %v425 = vadd.f32 %v406, %v423
    %v426 = vadd.f32 %v407, %v424
    %427 = vrot.lane.b32.xlu0 %v310, 113
    %v428 = vpop.permute.xlu0 %427
    %429 = vrot.lane.b32.xlu0 %v312, 113
    %v430 = vpop.permute.xlu0 %429
    %vm431 = vcmp.lt.s32.totalorder %v323, 113
    %v432 = vsel %vm431, %v428, %v430
    %v433 = vsel %vm431, %v430, %v428
    %v434 = vlaneseq
    %v435 = vshrl.u32 %v434, 7
    %v436 = vsub.s32 6, %v435
    %v437 = vrot.slane %v314, %v436
    %v438 = vlaneseq
    %v439 = vshrl.u32 %v438, 7
    %v440 = vsub.s32 6, %v439
    %v441 = vrot.slane %v315, %v440
    %v442 = vmul.f32 %v432, %v437
    %v443 = vmul.f32 %v433, %v441
    %v444 = vadd.f32 %v425, %v442
    %v445 = vadd.f32 %v426, %v443
    %446 = vrot.lane.b32.xlu0 %v310, 112
    %v447 = vpop.permute.xlu0 %446
    %448 = vrot.lane.b32.xlu0 %v312, 112
    %v449 = vpop.permute.xlu0 %448
    %vm450 = vcmp.lt.s32.totalorder %v323, 112
    %v451 = vsel %vm450, %v447, %v449
    %v452 = vsel %vm450, %v449, %v447
    %v453 = vlaneseq
    %v454 = vshrl.u32 %v453, 7
    %v455 = vsub.s32 7, %v454
    %v456 = vrot.slane %v314, %v455
    %v457 = vlaneseq
    %v458 = vshrl.u32 %v457, 7
    %v459 = vsub.s32 7, %v458
    %v460 = vrot.slane %v315, %v459
    %v461 = vmul.f32 %v451, %v456
    %v462 = vmul.f32 %v452, %v460
    %v463 = vadd.f32 %v444, %v461
    %v464 = vadd.f32 %v445, %v462
    %465 = vrot.lane.b32.xlu0 %v310, 111
    %v466 = vpop.permute.xlu0 %465
    %467 = vrot.lane.b32.xlu0 %v312, 111
    %v468 = vpop.permute.xlu0 %467
    %vm469 = vcmp.lt.s32.totalorder %v323, 111
    %v470 = vsel %vm469, %v466, %v468
    %v471 = vsel %vm469, %v468, %v466
    %v472 = vlaneseq
    %v473 = vshrl.u32 %v472, 7
    %v474 = vsub.s32 0, %v473
    %v475 = vrot.slane %v316, %v474
    %v476 = vlaneseq
    %v477 = vshrl.u32 %v476, 7
    %v478 = vsub.s32 0, %v477
    %v479 = vrot.slane %v317, %v478
    %v480 = vmul.f32 %v470, %v475
    %v481 = vmul.f32 %v471, %v479
    %v482 = vadd.f32 %v463, %v480
    %v483 = vadd.f32 %v464, %v481
    %v484 = vmax.f32 %v482, 0.0
    %v485 = vmax.f32 %v483, 0.0
    %s486 = sld [smem:[#allocation2]]
    %v487 = vstv %s486
    %v488 = vmul.f32 %v484, %v487
    %v489 = vmul.f32 %v485, %v487
    %v490 = vmul.f32 %v488, 0.5
    %v491 = vmul.f32 %v489, 0.5
    %v492 = vtanh.pop %v490
    %v493 = vtanh.pop %v491
    %v494 = vadd.f32 %v492, 1.0
    %v495 = vadd.f32 %v493, 1.0
    %v496 = vmul.f32 %v494, 0.5
    %v497 = vmul.f32 %v495, 0.5
    %v498 = vld [vmem:[%s6] sm:$0xff]
    %vm499 = vcmask 15360
    %v501 = vsel %vm499, %v498, 0
    %vm503 = vcmask 1041408
    %v505 = vsel %vm503, %v496, 0
    %v508 = vsel %vm503, %v497, 0
    %510 = vmatprep.subr.mxu0 %v508
    %511 = vmatpush1.msra.mxu0 %v505
    %512 = vmatprep.subr.mxu0 0.0
    %513 = vmatpush1.msra.mxu0 0.0
    %514 = vmatprep.subr.mxu0 0.0
    %515 = vmatpush1.msra.mxu0 0.0
    %516 = vmatprep.subr.mxu0 0.0
    %517 = vmatpush1.msra.mxu0 0.0
    %518 = vmatprep.subr.mxu0 0.0
    %519 = vmatpush1.msra.mxu0 0.0
    %520 = vmatprep.subr.mxu0 0.0
    %521 = vmatpush1.msra.mxu0 0.0
    %522 = vmatprep.subr.mxu0 0.0
    %523 = vmatpush1.msra.mxu0 0.0
    %524 = vmatprep.subr.mxu0 0.0
    %525 = vmatpush1.msra.mxu0 0.0
    %526 = vmatprep.subr.mxu0 0.0
    %527 = vmatpush1.msra.mxu0 0.0
    %528 = vmatprep.subr.mxu0 0.0
    %529 = vmatpush1.msra.mxu0 0.0
    %530 = vmatprep.subr.mxu0 0.0
    %531 = vmatpush1.msra.mxu0 0.0
    %532 = vmatprep.subr.mxu0 0.0
    %533 = vmatpush1.msra.mxu0 0.0
    %534 = vmatprep.subr.mxu0 0.0
    %535 = vmatpush1.msra.mxu0 0.0
    %536 = vmatprep.subr.mxu0 0.0
    %537 = vmatpush1.msra.mxu0 0.0
    %538 = vmatprep.subr.mxu0 0.0
    %539 = vmatpush1.msra.mxu0 0.0
    %540 = vmatprep.subr.mxu0 0.0
    %541 = vmatpush1.msra.mxu0 0.0
    %542 = vmatprep.subr.mxu0 0.0
    %543 = vmatpush1.msra.mxu0 0.0
    %544 = vmatprep.subr.mxu0 0.0
    %545 = vmatpush1.msra.mxu0 0.0
    %546 = vmatprep.subr.mxu0 0.0
    %547 = vmatpush1.msra.mxu0 0.0
    %548 = vmatprep.subr.mxu0 0.0
    %549 = vmatpush1.msra.mxu0 0.0
    %550 = vmatprep.subr.mxu0 0.0
    %551 = vmatpush1.msra.mxu0 0.0
    %552 = vmatprep.subr.mxu0 0.0
    %553 = vmatpush1.msra.mxu0 0.0
    %554 = vmatprep.subr.mxu0 0.0
    %555 = vmatpush1.msra.mxu0 0.0
    %556 = vmatprep.subr.mxu0 0.0
    %557 = vmatpush1.msra.mxu0 0.0
    %558 = vmatprep.subr.mxu0 0.0
    %559 = vmatpush1.msra.mxu0 0.0
    %560 = vmatprep.subr.mxu0 0.0
    %561 = vmatpush1.msra.mxu0 0.0
    %562 = vmatprep.subr.mxu0 0.0
    %563 = vmatpush1.msra.mxu0 0.0
    %564 = vmatprep.subr.mxu0 0.0
    %565 = vmatpush1.msra.mxu0 0.0
    %566 = vmatprep.subr.mxu0 0.0
    %567 = vmatpush1.msra.mxu0 0.0
    %568 = vmatprep.subr.mxu0 0.0
    %569 = vmatpush1.msra.mxu0 0.0
    %570 = vmatprep.subr.mxu0 0.0
    %571 = vmatpush1.msra.mxu0 0.0
    %572 = vmatprep.subr.mxu0 0.0
    %573 = vmatpush1.msra.mxu0 0.0
    %574 = vmatprep.mubr.f32.mxu0 0.0
    %575 = vmatmul.mubr.f32.gmra.mrb[0].mxu0 %v501
    %v576 = vpop.f32.mrb[0].mxu0
    %v577 = vadd.f32 0.0, %v576
    %v578 = vpop.f32.mrb[0].mxu0
    %v579 = vadd.f32 0.0, %v578
    %580 = vdwg.mxu0
    %v581 = vadd.f32 %v237, %v577
    %v582 = vadd.f32 %v238, %v579
    %v583 = vld [vmem:[%s7] sm:$0xff]
    %v585 = vsel %vm59, %v583, 0
    %587 = vmatprep.subr.mxu0 %v582
    %588 = vmatpush1.msra.mxu0 %v581
    %589 = vmatprep.subr.mxu0 0.0
    %590 = vmatpush1.msra.mxu0 0.0
    %591 = vmatprep.subr.mxu0 0.0
    %592 = vmatpush1.msra.mxu0 0.0
    %593 = vmatprep.subr.mxu0 0.0
    %594 = vmatpush1.msra.mxu0 0.0
    %595 = vmatprep.subr.mxu0 0.0
    %596 = vmatpush1.msra.mxu0 0.0
    %597 = vmatprep.subr.mxu0 0.0
    %598 = vmatpush1.msra.mxu0 0.0
    %599 = vmatprep.subr.mxu0 0.0
    %600 = vmatpush1.msra.mxu0 0.0
    %601 = vmatprep.subr.mxu0 0.0
    %602 = vmatpush1.msra.mxu0 0.0
    %603 = vmatprep.subr.mxu0 0.0
    %604 = vmatpush1.msra.mxu0 0.0
    %605 = vmatprep.subr.mxu0 0.0
    %606 = vmatpush1.msra.mxu0 0.0
    %607 = vmatprep.subr.mxu0 0.0
    %608 = vmatpush1.msra.mxu0 0.0
    %609 = vmatprep.subr.mxu0 0.0
    %610 = vmatpush1.msra.mxu0 0.0
    %611 = vmatprep.subr.mxu0 0.0
    %612 = vmatpush1.msra.mxu0 0.0
    %613 = vmatprep.subr.mxu0 0.0
    %614 = vmatpush1.msra.mxu0 0.0
    %615 = vmatprep.subr.mxu0 0.0
    %616 = vmatpush1.msra.mxu0 0.0
    %617 = vmatprep.subr.mxu0 0.0
    %618 = vmatpush1.msra.mxu0 0.0
    %619 = vmatprep.subr.mxu0 0.0
    %620 = vmatpush1.msra.mxu0 0.0
    %621 = vmatprep.subr.mxu0 0.0
    %622 = vmatpush1.msra.mxu0 0.0
    %623 = vmatprep.subr.mxu0 0.0
    %624 = vmatpush1.msra.mxu0 0.0
    %625 = vmatprep.subr.mxu0 0.0
    %626 = vmatpush1.msra.mxu0 0.0
    %627 = vmatprep.subr.mxu0 0.0
    %628 = vmatpush1.msra.mxu0 0.0
    %629 = vmatprep.subr.mxu0 0.0
    %630 = vmatpush1.msra.mxu0 0.0
    %631 = vmatprep.subr.mxu0 0.0
    %632 = vmatpush1.msra.mxu0 0.0
    %633 = vmatprep.subr.mxu0 0.0
    %634 = vmatpush1.msra.mxu0 0.0
    %635 = vmatprep.subr.mxu0 0.0
    %636 = vmatpush1.msra.mxu0 0.0
    %637 = vmatprep.subr.mxu0 0.0
    %638 = vmatpush1.msra.mxu0 0.0
    %639 = vmatprep.subr.mxu0 0.0
    %640 = vmatpush1.msra.mxu0 0.0
    %641 = vmatprep.subr.mxu0 0.0
    %642 = vmatpush1.msra.mxu0 0.0
    %643 = vmatprep.subr.mxu0 0.0
    %644 = vmatpush1.msra.mxu0 0.0
    %645 = vmatprep.subr.mxu0 0.0
    %646 = vmatpush1.msra.mxu0 0.0
    %647 = vmatprep.subr.mxu0 0.0
    %648 = vmatpush1.msra.mxu0 0.0
    %649 = vmatprep.subr.mxu0 0.0
    %650 = vmatpush1.msra.mxu0 0.0
    %651 = vmatprep.mubr.f32.mxu0 0.0
    %652 = vmatmul.mubr.f32.gmra.mrb[0].mxu0 %v585
    %v653 = vpop.f32.mrb[0].mxu0
    %v654 = vadd.f32 0.0, %v653
    %v655 = vpop.f32.mrb[0].mxu0
    %v656 = vadd.f32 0.0, %v655
    %657 = vdwg.mxu0
    %v658 = vmul.f32 %v654, 0.5
    %v659 = vmul.f32 %v656, 0.5
    %v660 = vtanh.pop %v658
    %v661 = vtanh.pop %v659
    %v662 = vadd.f32 %v660, 1.0
    %v663 = vadd.f32 %v661, 1.0
    %v664 = vmul.f32 %v662, 0.5
    %v665 = vmul.f32 %v663, 0.5
    %666 = vst [vmem:[#allocation8] sm:$0xff] %v664
    %667 = vst [vmem:[#allocation8 + $0x8] sm:$0xff] %v665
    // Predicated region
    $region42: #{tpu_custom_call.1} parent=1 // pred_check
      _
    $region43: #{tpu_custom_call.1} parent=1 // pred_check_branch
      %669 = sbr.rel (0) target = $region45
    $region44: #{tpu_custom_call.1} parent=1 // pred_region
      %s671 = ssub.s32 256, 256
      %672 = vsyncadd [#allocation5], %s671
      %s674 = sshll.u32 [#allocation8], 4
      %s675 = int_to_ptr.vmem [resolvable:$true] %s674
      %677 = dma.vmem_to_hbm [thread:$0]  %s675, 256, %s8, [#allocation5]
    $region45: #{tpu_custom_call.1} parent=1 // pred_fallthru
      _
    // Predicated region
    $region46: #{tpu_custom_call.1} parent=1 // pred_check
      _
    $region47: #{tpu_custom_call.1} parent=1 // pred_check_branch
      %679 = sbr.rel (0) target = $region49
    $region48: #{tpu_custom_call.1} parent=1 // pred_region
      %680 = dma.done [#allocation5], 256
    $region49: #{tpu_custom_call.1} parent=1 // pred_fallthru
      _
    %681 = vsyncpa [#allocation4], 1
    %682 = vsyncpa [#allocation7], 1
    %683 = vsyncpa [#allocation5], 1

</llo_original>
